<compile_context>
chip_gen: v7x
topology: tpu7x:2x2x1
jax: 0.10.0
libtpu: 0.0.40
codegen_flags: <defaults>
</compile_context>

<pallas_src>
import functools
from typing import List, Optional

import jax
import jax.numpy as jnp
from jax.experimental import pallas as pl
from jax.experimental.pallas import tpu as pltpu

LANE = 128  # lane width of a vreg (last dim)


def _round_up(x: int, m: int) -> int:
    return ((x + m - 1) // m) * m


def _min_sublane(dtype) -> int:
    """Minimum second-to-last tile dim for a dtype: 8 (f32), 16 (bf16), 32 (int8/fp8)."""
    return max(8, 32 // jnp.dtype(dtype).itemsize)


def _vmem_capacity_bytes() -> int:
    """Per-core VMEM capacity; conservative 64 MiB (v7x) if the query is unavailable."""
    try:
        cap = int(pltpu.get_tpu_info().vmem_capacity_bytes)
        if cap > 0:
            return cap
    except Exception:
        pass
    return 64 << 20


# --------------------------------------------------------------------------------------
# Kernels
# --------------------------------------------------------------------------------------
def _mlp_fused_kernel(*refs, num_layers: int):
    """Fused MLP: (Linear + SiLU) x (num_layers-1) followed by a plain Linear.

    refs = (x_ref, w0_ref, b0_ref, w1_ref, b1_ref, ..., o_ref)
      x_ref : [TILE_B, D0]   VMEM (unpadded feature width)
      wi_ref: [Di, Di+1]     VMEM (lane-padded, resident & single-buffered across tiles)
      bi_ref: [1, Di+1]      VMEM (f32, lane-padded)
      o_ref : [TILE_B, DL]   VMEM (lane-padded, lane-dense store)
    """
    x_ref = refs[0]
    out_ref = refs[-1]
    wb = refs[1:-1]
    compute_dtype = x_ref.dtype

    h = x_ref[...]                                    # native dtype, no up-cast
    for i in range(num_layers):
        w = wb[2 * i][...]
        b = wb[2 * i + 1][...]                        # (1, Dout) f32, broadcasts over rows
        y = jnp.dot(h, w, preferred_element_type=jnp.float32) + b
        if i < num_layers - 1:
            if compute_dtype == jnp.float32:
                h = y * jax.nn.sigmoid(y)             # exact f32 SiLU
            else:
                # bf16/low-precision activations: SiLU at native dtype (bf16 EUP on v6e/v7x)
                yl = y.astype(compute_dtype)
                h = yl * jax.nn.sigmoid(yl)
            h = h.astype(compute_dtype)
        else:
            h = y
    out_ref[...] = h.astype(out_ref.dtype)


def _linear_kernel(x_ref, w_ref, b_ref, o_ref, *, apply_silu: bool):
    """One N-tiled Linear (+ optional SiLU) block: y = x @ W[:, j*tn:(j+1)*tn] + b."""
    y = jnp.dot(x_ref[...], w_ref[...], preferred_element_type=jnp.float32) + b_ref[...]
    if apply_silu:
        if o_ref.dtype == jnp.float32:
            y = y * jax.nn.sigmoid(y)
        else:
            yl = y.astype(o_ref.dtype)
            y = yl * jax.nn.sigmoid(yl)
    o_ref[...] = y.astype(o_ref.dtype)


# --------------------------------------------------------------------------------------
# Wrappers
# --------------------------------------------------------------------------------------
def _linear_layer(x, w, b, *, apply_silu: bool, tile_b: int, tile_n: int = 512):
    """Layer-by-layer fallback: output-feature (N) tiled Linear(+SiLU) as one pallas_call."""
    B, Din = x.shape
    Dout = w.shape[1]
    itemsize = jnp.dtype(x.dtype).itemsize
    min_sub = _min_sublane(x.dtype)

    tile_b = max(min_sub, _round_up(min(tile_b, _round_up(B, min_sub)), min_sub))
    B_p = _round_up(B, tile_b)
    tile_n = min(_round_up(tile_n, LANE), _round_up(Dout, LANE))
    dout_p = _round_up(Dout, tile_n)

    # zero-padding is inert: zero weight cols / bias entries -> zero (sliced off below)
    x_p = x if B_p == B else jnp.zeros((B_p, Din), x.dtype).at[:B].set(x)
    w_p = jnp.zeros((Din, dout_p), w.dtype).at[:, :Dout].set(w)
    b_p = jnp.zeros((1, dout_p), jnp.float32).at[0, :Dout].set(b.astype(jnp.float32))

    grid = (B_p // tile_b, dout_p // tile_n)

    vmem_need = (
        2 * tile_b * Din * itemsize            # x tile (double-buffered)
        + 2 * Din * tile_n * jnp.dtype(w.dtype).itemsize   # weight N-tile
        + 2 * tile_n * 4                       # bias N-tile
        + 2 * tile_b * tile_n * itemsize       # output tile
        + 4 * tile_b * tile_n * 4              # f32 temporaries
        + (4 << 20)
    )
    budget = int(0.65 * _vmem_capacity_bytes())
    vmem_limit = int(min(max(vmem_need, 16 << 20), budget))
    # TODO(synk): add a K-reduction grid axis (f32 VMEM accumulator) when tile_b*Din alone
    #             would overflow VMEM (extremely wide input features).

    out_p = pl.pallas_call(
        functools.partial(_linear_kernel, apply_silu=apply_silu),
        out_shape=jax.ShapeDtypeStruct((B_p, dout_p), x.dtype),
        grid_spec=pltpu.PrefetchScalarGridSpec(
            num_scalar_prefetch=0,
            grid=grid,
            in_specs=[
                pl.BlockSpec((tile_b, Din), lambda i, j: (i, 0)),
                pl.BlockSpec((Din, tile_n), lambda i, j: (0, j)),
                pl.BlockSpec((1, tile_n), lambda i, j: (0, j)),
            ],
            out_specs=pl.BlockSpec((tile_b, tile_n), lambda i, j: (i, j)),
        ),
        compiler_params=pltpu.CompilerParams(
            dimension_semantics=("parallel", "parallel"),
            vmem_limit_bytes=vmem_limit,
        ),
    )(x_p, w_p, b_p)
    return out_p[:B, :Dout]


def mlp_forward(x, params, *, tile_b: Optional[int] = None, mode: str = "auto"):
    """Forward pass of the MLP.

    x:      [B, in_features]
    params: list of (w, b) with w: [Din, Dout] (PyTorch weight.T), b: [Dout]
    mode:   "auto" (fused if resident params fit VMEM), "fused", or "layerwise".
    """
    B, Din = x.shape
    num_layers = len(params)
    dims = [Din] + [w.shape[1] for (w, _) in params]
    # Input feature dim unpadded (block == full array dim is legal; Mosaic pads K into vregs
    # for free); hidden/output dims lane-padded -> lane-dense stores and dense vregs.
    dims_p = [Din] + [_round_up(d, LANE) for d in dims[1:]]

    itemsize = jnp.dtype(x.dtype).itemsize
    min_sub = _min_sublane(x.dtype)
    vmem_cap = _vmem_capacity_bytes()
    budget = int(0.65 * vmem_cap)

    # Generation-aware default batch tile: 512 rows on 128-MiB-VMEM chips (v5e/v6e),
    # 256 rows on v7x (64 MiB).  Both are multiples of 256 (full MXU M packing on v6e+).
    if tile_b is None:
        tile_b = 512 if vmem_cap >= (96 << 20) else 256
    tile_b = max(min_sub, _round_up(min(tile_b, _round_up(B, min_sub)), min_sub))
    # v7x megacore: ensure >= 2 grid steps so both TensorCores get work (free on 1-TC chips).
    while _round_up(B, tile_b) // tile_b < 2 and tile_b > min_sub:
        nt = max(min_sub, _round_up(tile_b // 2, min_sub))
        if nt == tile_b:
            break
        tile_b = nt
    B_p = _round_up(B, tile_b)

    # Resident-parameter footprint (single-buffered thanks to pl.Buffered(1)).
    param_bytes = 0
    for i, (w, _) in enumerate(params):
        param_bytes += dims_p[i] * dims_p[i + 1] * jnp.dtype(w.dtype).itemsize
        param_bytes += dims_p[i + 1] * 4
    io_tile_bytes = tile_b * (dims_p[0] + dims_p[-1]) * itemsize
    act_bytes = tile_b * max(dims_p) * 4
    vmem_need = param_bytes + 2 * io_tile_bytes + 4 * act_bytes + (4 << 20)

    use_fused = (mode == "fused") or (mode == "auto" and vmem_need <= budget)
    if not use_fused:
        # Resident weights would overflow VMEM: N-tiled layer-by-layer fallback
        # (intermediate activations round-trip through HBM).
        h = x
        for i, (w, b) in enumerate(params):
            h = _linear_layer(h, w, b, apply_silu=(i < num_layers - 1), tile_b=tile_b)
        return h

    # --- fused path: zero-pad (pads inert: SiLU(0)=0, zero weight rows/cols, zero bias) ---
    x_p = x if B_p == B else jnp.zeros((B_p, Din), x.dtype).at[:B].set(x)
    padded_params = []
    for i, (w, b) in enumerate(params):
        din_p, dout_p = dims_p[i], dims_p[i + 1]
        w_p = jnp.zeros((din_p, dout_p), w.dtype).at[: w.shape[0], : w.shape[1]].set(w)
        b_p = jnp.zeros((1, dout_p), jnp.float32).at[0, : b.shape[0]].set(
            b.astype(jnp.float32))
        padded_params.append((w_p, b_p))

    grid = (B_p // tile_b,)

    # Batch-gridded x / out; weights & biases resident (constant block idx, single buffer).
    in_specs = [pl.BlockSpec((tile_b, dims_p[0]), lambda i: (i, 0))]
    for li in range(num_layers):
        din_p, dout_p = dims_p[li], dims_p[li + 1]
        in_specs.append(pl.BlockSpec((din_p, dout_p), lambda i: (0, 0),
                                     pipeline_mode=pl.Buffered(1)))
        in_specs.append(pl.BlockSpec((1, dout_p), lambda i: (0, 0),
                                     pipeline_mode=pl.Buffered(1)))
    out_spec = pl.BlockSpec((tile_b, dims_p[-1]), lambda i: (i, 0))

    # Cost estimate: logical flops/transcendentals, bytes from the padded arrays we DMA.
    flops = 2 * B * sum(dims[i] * dims[i + 1] for i in range(num_layers))
    transcendentals = B * sum(dims[1:-1])
    bytes_accessed = (
        x_p.size * x_p.dtype.itemsize
        + sum(w_p.size * w_p.dtype.itemsize + b_p.size * b_p.dtype.itemsize
              for w_p, b_p in padded_params)
        + B_p * dims_p[-1] * itemsize
    )
    vmem_limit = int(min(max(vmem_need, 16 << 20), budget))

    kernel = functools.partial(_mlp_fused_kernel, num_layers=num_layers)
    flat_inputs = [x_p]
    for w_p, b_p in padded_params:
        flat_inputs += [w_p, b_p]

    out_p = pl.pallas_call(
        kernel,
        out_shape=jax.ShapeDtypeStruct((B_p, dims_p[-1]), x.dtype),
        grid_spec=pltpu.PrefetchScalarGridSpec(
            num_scalar_prefetch=0,
            grid=grid,
            in_specs=in_specs,
            out_specs=out_spec,
        ),
        compiler_params=pltpu.CompilerParams(
            dimension_semantics=("parallel",),        # megacore sharding on v7x
            vmem_limit_bytes=vmem_limit,
        ),
        cost_estimate=pl.CostEstimate(
            flops=int(flops),
            transcendentals=int(transcendentals),
            bytes_accessed=int(bytes_accessed),
        ),
    )(*flat_inputs)

    return out_p[:B, : dims[-1]]


# --------------------------------------------------------------------------------------
# Params / reference
# --------------------------------------------------------------------------------------
def init_mlp_params(key, in_features: int, out_features: int, layers: List[int]):
    """Parameter init mirroring the PyTorch module.

    Weights: kaiming_normal_(mode='fan_in', nonlinearity='relu') -> N(0, sqrt(2/fan_in)).
    Biases:  PyTorch nn.Linear default -> U(-1/sqrt(fan_in), 1/sqrt(fan_in)).
    Stored transposed ([in, out]) for the x @ W convention used in the kernel.
    """
    dims = [in_features] + list(layers) + [out_features]
    params = []
    for i in range(len(dims) - 1):
        fan_in, fan_out = dims[i], dims[i + 1]
        key, kw, kb = jax.random.split(key, 3)
        w = jax.random.normal(kw, (fan_in, fan_out), jnp.float32) * jnp.sqrt(2.0 / fan_in)
        bound = 1.0 / jnp.sqrt(fan_in)
        b = jax.random.uniform(kb, (fan_out,), jnp.float32, minval=-bound, maxval=bound)
        params.append((w, b))
    return params


def mlp_reference(x, params):
    """Pure-JAX reference for correctness checking."""
    n = len(params)
    for i, (w, b) in enumerate(params):
        x = x @ w + b
        if i < n - 1:
            x = x * jax.nn.sigmoid(x)
    return x


if __name__ == "__main__":
    key = jax.random.PRNGKey(0)
    in_features, out_features = 32, 8
    hidden_layers = [64, 64]
    batch = 8

    kx, kx2, kp = jax.random.split(key, 3)
    x = jax.random.normal(kx, (batch, in_features), jnp.float32)
    params = init_mlp_params(kp, in_features, out_features, hidden_layers)

    out = jax.block_until_ready(mlp_forward(x, params))
    ref = mlp_reference(x, params)
    assert out.shape == (batch, out_features)
    assert jnp.allclose(out, ref, atol=1e-5, rtol=1e-5), "mismatch vs reference (fused)"

    # Ragged batch (not a tile multiple) + multi-step batch grid (>=2 steps rule).
    x2 = jax.random.normal(kx2, (20, in_features), jnp.float32)
    out2 = jax.block_until_ready(mlp_forward(x2, params))
    ref2 = mlp_reference(x2, params)
    assert out2.shape == (20, out_features)
    assert jnp.allclose(out2, ref2, atol=1e-5, rtol=1e-5), "mismatch vs reference (ragged)"

    # Exercise the N-tiled layer-by-layer fallback (used when resident weights would
    # overflow the generation-aware VMEM budget, e.g. >=2048-wide f32 layers on v7x).
    out3 = jax.block_until_ready(mlp_forward(x2, params, mode="layerwise"))
    assert out3.shape == (20, out_features)
    assert jnp.allclose(out3, ref2, atol=1e-5, rtol=1e-5), "mismatch vs reference (layerwise)"

    print("KERNEL_OK")
</pallas_src>

<mosaic_0001>
module attributes {stable_mosaic.version = 11 : i64} {
  func.func @_mlp_fused_kernel(%arg0: i32, %arg1: memref<8x32xf32, #tpu.memory_space<vmem>>, %arg2: memref<32x128xf32, #tpu.memory_space<vmem>>, %arg3: memref<1x128xf32, #tpu.memory_space<vmem>>, %arg4: memref<128x128xf32, #tpu.memory_space<vmem>>, %arg5: memref<1x128xf32, #tpu.memory_space<vmem>>, %arg6: memref<128x128xf32, #tpu.memory_space<vmem>>, %arg7: memref<1x128xf32, #tpu.memory_space<vmem>>, %arg8: memref<8x128xf32, #tpu.memory_space<vmem>>) attributes {dimension_semantics = [#tpu.dimension_semantics<parallel>], iteration_bounds = array<i64: 1>, scalar_prefetch = 0 : i64, scratch_operands = 0 : i64, tpu.core_type = #tpu.core_type<tc>, window_params = [{transform_indices = @transform_0, window_bounds = array<i64: 8, 32>}, {pipeline_mode = #tpu.pipeline_mode<synchronous>, transform_indices = @transform_1, window_bounds = array<i64: 32, 128>}, {pipeline_mode = #tpu.pipeline_mode<synchronous>, transform_indices = @transform_2, window_bounds = array<i64: 1, 128>}, {pipeline_mode = #tpu.pipeline_mode<synchronous>, transform_indices = @transform_3, window_bounds = array<i64: 128, 128>}, {pipeline_mode = #tpu.pipeline_mode<synchronous>, transform_indices = @transform_4, window_bounds = array<i64: 1, 128>}, {pipeline_mode = #tpu.pipeline_mode<synchronous>, transform_indices = @transform_5, window_bounds = array<i64: 128, 128>}, {pipeline_mode = #tpu.pipeline_mode<synchronous>, transform_indices = @transform_6, window_bounds = array<i64: 1, 128>}, {transform_indices = @transform_7, window_bounds = array<i64: 8, 128>}]} {
    %c0 = arith.constant 0 : index
    %c0_0 = arith.constant 0 : index
    %0 = vector.load %arg1[%c0, %c0_0] : memref<8x32xf32, #tpu.memory_space<vmem>>, vector<8x32xf32>
    %c0_1 = arith.constant 0 : index
    %c0_2 = arith.constant 0 : index
    %1 = vector.load %arg2[%c0_1, %c0_2] : memref<32x128xf32, #tpu.memory_space<vmem>>, vector<32x128xf32>
    %c0_3 = arith.constant 0 : index
    %c0_4 = arith.constant 0 : index
    %2 = vector.load %arg3[%c0_3, %c0_4] : memref<1x128xf32, #tpu.memory_space<vmem>>, vector<1x128xf32>
    %cst = arith.constant dense<0.000000e+00> : vector<8x128xf32>
    %3 = tpu.matmul %0, %1, %cst {dimension_numbers = #tpu.dot_dimension_numbers<[1], [0], [0], [1], [0, 0, 1, 1], [], []>} : vector<8x32xf32>, vector<32x128xf32>, vector<8x128xf32> -> vector<8x128xf32>
    %4 = vector.broadcast %2 : vector<1x128xf32> to vector<8x128xf32>
    %5 = arith.addf %3, %4 : vector<8x128xf32>
    %6 = arith.negf %5 : vector<8x128xf32>
    %7 = math.exp %6 : vector<8x128xf32>
    %cst_5 = arith.constant 1.000000e+00 : f32
    %8 = vector.broadcast %cst_5 : f32 to vector<8x128xf32>
    %9 = arith.addf %8, %7 : vector<8x128xf32>
    %10 = arith.divf %8, %9 : vector<8x128xf32>
    %11 = arith.mulf %5, %10 : vector<8x128xf32>
    %c0_6 = arith.constant 0 : index
    %c0_7 = arith.constant 0 : index
    %12 = vector.load %arg4[%c0_6, %c0_7] : memref<128x128xf32, #tpu.memory_space<vmem>>, vector<128x128xf32>
    %c0_8 = arith.constant 0 : index
    %c0_9 = arith.constant 0 : index
    %13 = vector.load %arg5[%c0_8, %c0_9] : memref<1x128xf32, #tpu.memory_space<vmem>>, vector<1x128xf32>
    %cst_10 = arith.constant dense<0.000000e+00> : vector<8x128xf32>
    %14 = tpu.matmul %11, %12, %cst_10 {dimension_numbers = #tpu.dot_dimension_numbers<[1], [0], [0], [1], [0, 0, 1, 1], [], []>} : vector<8x128xf32>, vector<128x128xf32>, vector<8x128xf32> -> vector<8x128xf32>
    %15 = vector.broadcast %13 : vector<1x128xf32> to vector<8x128xf32>
    %16 = arith.addf %14, %15 : vector<8x128xf32>
    %17 = arith.negf %16 : vector<8x128xf32>
    %18 = math.exp %17 : vector<8x128xf32>
    %cst_11 = arith.constant 1.000000e+00 : f32
    %19 = vector.broadcast %cst_11 : f32 to vector<8x128xf32>
    %20 = arith.addf %19, %18 : vector<8x128xf32>
    %21 = arith.divf %19, %20 : vector<8x128xf32>
    %22 = arith.mulf %16, %21 : vector<8x128xf32>
    %c0_12 = arith.constant 0 : index
    %c0_13 = arith.constant 0 : index
    %23 = vector.load %arg6[%c0_12, %c0_13] : memref<128x128xf32, #tpu.memory_space<vmem>>, vector<128x128xf32>
    %c0_14 = arith.constant 0 : index
    %c0_15 = arith.constant 0 : index
    %24 = vector.load %arg7[%c0_14, %c0_15] : memref<1x128xf32, #tpu.memory_space<vmem>>, vector<1x128xf32>
    %cst_16 = arith.constant dense<0.000000e+00> : vector<8x128xf32>
    %25 = tpu.matmul %22, %23, %cst_16 {dimension_numbers = #tpu.dot_dimension_numbers<[1], [0], [0], [1], [0, 0, 1, 1], [], []>} : vector<8x128xf32>, vector<128x128xf32>, vector<8x128xf32> -> vector<8x128xf32>
    %26 = vector.broadcast %24 : vector<1x128xf32> to vector<8x128xf32>
    %27 = arith.addf %25, %26 : vector<8x128xf32>
    %c0_17 = arith.constant 0 : index
    %c0_18 = arith.constant 0 : index
    %28 = vector.load %arg8[%c0_17, %c0_18] : memref<8x128xf32, #tpu.memory_space<vmem>>, vector<8x128xf32>
    tpu.vector_store %arg8[%c0_17, %c0_18], %27 {strides = array<i32>} : memref<8x128xf32, #tpu.memory_space<vmem>>, vector<8x128xf32>,
    return
  }
  func.func @transform_0(%arg0: i32) -> (i32, i32) {
    %c0_i32 = arith.constant 0 : i32
    %c0_i32_0 = arith.constant 0 : i32
    return %arg0, %c0_i32 : i32, i32
  }
  func.func @transform_1(%arg0: i32) -> (i32, i32) {
    %c0_i32 = arith.constant 0 : i32
    %c0_i32_0 = arith.constant 0 : i32
    %c0_i32_1 = arith.constant 0 : i32
    return %c0_i32, %c0_i32_0 : i32, i32
  }
  func.func @transform_2(%arg0: i32) -> (i32, i32) {
    %c0_i32 = arith.constant 0 : i32
    %c0_i32_0 = arith.constant 0 : i32
    %c0_i32_1 = arith.constant 0 : i32
    return %c0_i32, %c0_i32_0 : i32, i32
  }
  func.func @transform_3(%arg0: i32) -> (i32, i32) {
    %c0_i32 = arith.constant 0 : i32
    %c0_i32_0 = arith.constant 0 : i32
    %c0_i32_1 = arith.constant 0 : i32
    return %c0_i32, %c0_i32_0 : i32, i32
  }
  func.func @transform_4(%arg0: i32) -> (i32, i32) {
    %c0_i32 = arith.constant 0 : i32
    %c0_i32_0 = arith.constant 0 : i32
    %c0_i32_1 = arith.constant 0 : i32
    return %c0_i32, %c0_i32_0 : i32, i32
  }
  func.func @transform_5(%arg0: i32) -> (i32, i32) {
    %c0_i32 = arith.constant 0 : i32
    %c0_i32_0 = arith.constant 0 : i32
    %c0_i32_1 = arith.constant 0 : i32
    return %c0_i32, %c0_i32_0 : i32, i32
  }
  func.func @transform_6(%arg0: i32) -> (i32, i32) {
    %c0_i32 = arith.constant 0 : i32
    %c0_i32_0 = arith.constant 0 : i32
    %c0_i32_1 = arith.constant 0 : i32
    return %c0_i32, %c0_i32_0 : i32, i32
  }
  func.func @transform_7(%arg0: i32) -> (i32, i32) {
    %c0_i32 = arith.constant 0 : i32
    %c0_i32_0 = arith.constant 0 : i32
    return %arg0, %c0_i32 : i32, i32
  }
}

</mosaic_0001>

<llo_original>
// kernel: tpu_custom_call.1
$region0: #{tpu_custom_call.1}
  #allocation0 [shape = 'u32[]', space=smem, size = 0x4, offset = 0x4, fixed_abs, tag = 'smem constant byte address 0x4 - core index']
  #allocation1 [shape = 'u32[144,128]{1,0:T(1,128)}', space=vmem, size = 0x12000, scoped, tag = 'internal scratch']
  %s0 = inlined_call_operand.hbm [shape: f32[8,32], index: 0, kind: input, shape index: {}]
  %s1 = inlined_call_operand.hbm [shape: f32[32,128], index: 1, kind: input, shape index: {}]
  %s2 = inlined_call_operand.vmem [shape: f32[1,128], index: 2, kind: input, shape index: {}]
  %s3 = inlined_call_operand.hbm [shape: f32[128,128], index: 3, kind: input, shape index: {}]
  %s4 = inlined_call_operand.vmem [shape: f32[1,128], index: 4, kind: input, shape index: {}]
  %s5 = inlined_call_operand.hbm [shape: f32[128,128], index: 5, kind: input, shape index: {}]
  %s6 = inlined_call_operand.vmem [shape: f32[1,128], index: 6, kind: input, shape index: {}]
  %s7 = inlined_call_operand.hbm [shape: f32[8,128], index: 7, kind: output, shape index: {}]
  %s8 = sld [smem:[#allocation0]]
  $region54: #{tpu_custom_call.1} parent=0
    _
  %s10 = ssub.s32 1, %s8
  %s11 = scalar_select 0, %s10, %s8
  $region1: #{tpu_custom_call.1} parent=0
    #allocation2 [shape = 'u8[4096]{0}', space=vmem, size = 0x1000, scoped, tag = 'input window, operand 0, single buffered']
    #allocation3 [shape = 's32[1]{0}', space=sflag, size = 0x4, scoped, tag = 'scoped memory for tpu_custom_call.1']
    #allocation4 [shape = 's32[1]{0}', space=sflag, size = 0x4, scoped, tag = 'scoped memory for tpu_custom_call.1']
    #allocation5 [shape = 'u8[16384]{0}', space=vmem, size = 0x4000, scoped, tag = 'input window, operand 1, single buffered']
    #allocation6 [shape = 's32[1]{0}', space=sflag, size = 0x4, scoped, tag = 'scoped memory for tpu_custom_call.1']
    #allocation7 [shape = 'u8[65536]{0}', space=vmem, size = 0x10000, scoped, tag = 'input window, operand 3, single buffered']
    #allocation8 [shape = 'u8[65536]{0}', space=vmem, size = 0x10000, scoped, tag = 'input window, operand 5, single buffered']
    #allocation9 [shape = 's32[1]{0}', space=sflag, size = 0x4, scoped, tag = 'scoped memory for tpu_custom_call.1']
    #allocation10 [shape = 'u8[4096]{0}', space=vmem, size = 0x1000, scoped, tag = 'output window, operand 0, single buffered']
    %12 = vsyncpa [#allocation3], 0
    %13 = vsyncpa [#allocation6], 0
    %14 = vsyncpa [#allocation9], 0
    %15 = vsyncpa [#allocation4], 0
    // Predicated region
    $region2: #{tpu_custom_call.1} parent=1 // pred_check
      _
    $region3: #{tpu_custom_call.1} parent=1 // pred_check_branch
      %17 = sbr.rel (0) target = $region5
    $region4: #{tpu_custom_call.1} parent=1 // pred_region
      %s19 = ssub.s32 128, 128
      %20 = vsyncadd [#allocation3], %s19
      %s22 = sshll.u32 [#allocation2], 4
      %s23 = int_to_ptr.vmem [resolvable:$true] %s22
      %25 = dma.hbm_to_vmem [thread:$0]  %s0, 128, %s23, [#allocation3]
    $region5: #{tpu_custom_call.1} parent=1 // pred_fallthru
      _
    // Predicated region
    $region6: #{tpu_custom_call.1} parent=1 // pred_check
      _
    $region7: #{tpu_custom_call.1} parent=1 // pred_check_branch
      %27 = sbr.rel (0) target = $region9
    $region8: #{tpu_custom_call.1} parent=1 // pred_region
      %s29 = ssub.s32 512, 512
      %30 = vsyncadd [#allocation6], %s29
      %s31 = sshll.u32 [#allocation5], 4
      %s32 = int_to_ptr.vmem [resolvable:$true] %s31
      %37 = dma.hbm_to_vmem [thread:$0]  %s1, 512, %s32, [#allocation6], 128, 128, 8
    $region9: #{tpu_custom_call.1} parent=1 // pred_fallthru
      _
    // Predicated region
    $region10: #{tpu_custom_call.1} parent=1 // pred_check
      _
    $region11: #{tpu_custom_call.1} parent=1 // pred_check_branch
      %39 = sbr.rel (0) target = $region13
    $region12: #{tpu_custom_call.1} parent=1 // pred_region
      _
    $region13: #{tpu_custom_call.1} parent=1 // pred_fallthru
      _
    // Predicated region
    $region14: #{tpu_custom_call.1} parent=1 // pred_check
      _
    $region15: #{tpu_custom_call.1} parent=1 // pred_check_branch
      %41 = sbr.rel (0) target = $region17
    $region16: #{tpu_custom_call.1} parent=1 // pred_region
      %s43 = ssub.s32 2048, 2048
      %44 = vsyncadd [#allocation6], %s43
      %s45 = sshll.u32 [#allocation7], 4
      %s46 = int_to_ptr.vmem [resolvable:$true] %s45
      %51 = dma.hbm_to_vmem [thread:$0]  %s3, 2048, %s46, [#allocation6], 128, 128, 8
    $region17: #{tpu_custom_call.1} parent=1 // pred_fallthru
      _
    // Predicated region
    $region18: #{tpu_custom_call.1} parent=1 // pred_check
      _
    $region19: #{tpu_custom_call.1} parent=1 // pred_check_branch
      %53 = sbr.rel (0) target = $region21
    $region20: #{tpu_custom_call.1} parent=1 // pred_region
      _
    $region21: #{tpu_custom_call.1} parent=1 // pred_fallthru
      _
    // Predicated region
    $region22: #{tpu_custom_call.1} parent=1 // pred_check
      _
    $region23: #{tpu_custom_call.1} parent=1 // pred_check_branch
      %55 = sbr.rel (0) target = $region25
    $region24: #{tpu_custom_call.1} parent=1 // pred_region
      %s57 = ssub.s32 2048, 2048
      %58 = vsyncadd [#allocation9], %s57
      %s59 = sshll.u32 [#allocation8], 4
      %s60 = int_to_ptr.vmem [resolvable:$true] %s59
      %65 = dma.hbm_to_vmem [thread:$0]  %s5, 2048, %s60, [#allocation9], 128, 128, 8
    $region25: #{tpu_custom_call.1} parent=1 // pred_fallthru
      _
    // Predicated region
    $region26: #{tpu_custom_call.1} parent=1 // pred_check
      _
    $region27: #{tpu_custom_call.1} parent=1 // pred_check_branch
      %67 = sbr.rel (0) target = $region29
    $region28: #{tpu_custom_call.1} parent=1 // pred_region
      _
    $region29: #{tpu_custom_call.1} parent=1 // pred_fallthru
      _
    // Predicated region
    $region30: #{tpu_custom_call.1} parent=1 // pred_check
      _
    $region31: #{tpu_custom_call.1} parent=1 // pred_check_branch
      %69 = sbr.rel (0) target = $region33
    $region32: #{tpu_custom_call.1} parent=1 // pred_region
      %70 = dma.done [#allocation3], 128
    $region33: #{tpu_custom_call.1} parent=1 // pred_fallthru
      _
    // Predicated region
    $region34: #{tpu_custom_call.1} parent=1 // pred_check
      _
    $region35: #{tpu_custom_call.1} parent=1 // pred_check_branch
      %72 = sbr.rel (0) target = $region37
    $region36: #{tpu_custom_call.1} parent=1 // pred_region
      %73 = dma.done [#allocation6], 512
    $region37: #{tpu_custom_call.1} parent=1 // pred_fallthru
      _
    // Predicated region
    $region38: #{tpu_custom_call.1} parent=1 // pred_check
      _
    $region39: #{tpu_custom_call.1} parent=1 // pred_check_branch
      %75 = sbr.rel (0) target = $region41
    $region40: #{tpu_custom_call.1} parent=1 // pred_region
      %76 = dma.done [#allocation6], 2048
    $region41: #{tpu_custom_call.1} parent=1 // pred_fallthru
      _
    // Predicated region
    $region42: #{tpu_custom_call.1} parent=1 // pred_check
      _
    $region43: #{tpu_custom_call.1} parent=1 // pred_check_branch
      %78 = sbr.rel (0) target = $region45
    $region44: #{tpu_custom_call.1} parent=1 // pred_region
      %79 = dma.done [#allocation9], 2048
    $region45: #{tpu_custom_call.1} parent=1 // pred_fallthru
      _
    %v80 = vld [vmem:[#allocation2] sm:$0xff]
    %v81 = vld [vmem:[#allocation5] sm:$0xff]
    %v82 = vld [vmem:[#allocation5 + $0x8] sm:$0xff]
    %v83 = vld [vmem:[#allocation5 + $0x10] sm:$0xff]
    %v84 = vld [vmem:[#allocation5 + $0x18] sm:$0xff]
    %v85 = vld [vmem:[%s2] sm:$0x1]
    %v87 = vlaneseq
    %v88 = vshrl.u32 %v87, 7
    %v89 = vsub.s32 0, %v88
    %v90 = vrot.slane %v85, %v89
    %vm92 = vcmask 261120
    %v94 = vsel %vm92, %v80, 0
    %96 = vmatprep.subr.mxu0 0.0
    %97 = vmatpush1.msra.mxu0 %v81
    %98 = vmatprep.subr.mxu0 0.0
    %99 = vmatpush1.msra.mxu0 %v82
    %100 = vmatprep.subr.mxu0 0.0
    %101 = vmatpush1.msra.mxu0 %v83
    %102 = vmatprep.subr.mxu0 0.0
    %103 = vmatpush1.msra.mxu0 %v84
    %104 = vmatprep.subr.mxu0 0.0
    %105 = vmatpush1.msra.mxu0 0.0
    %106 = vmatprep.subr.mxu0 0.0
    %107 = vmatpush1.msra.mxu0 0.0
    %108 = vmatprep.subr.mxu0 0.0
    %109 = vmatpush1.msra.mxu0 0.0
    %110 = vmatprep.subr.mxu0 0.0
    %111 = vmatpush1.msra.mxu0 0.0
    %112 = vmatprep.subr.mxu0 0.0
    %113 = vmatpush1.msra.mxu0 0.0
    %114 = vmatprep.subr.mxu0 0.0
    %115 = vmatpush1.msra.mxu0 0.0
    %116 = vmatprep.subr.mxu0 0.0
    %117 = vmatpush1.msra.mxu0 0.0
    %118 = vmatprep.subr.mxu0 0.0
    %119 = vmatpush1.msra.mxu0 0.0
    %120 = vmatprep.subr.mxu0 0.0
    %121 = vmatpush1.msra.mxu0 0.0
    %122 = vmatprep.subr.mxu0 0.0
    %123 = vmatpush1.msra.mxu0 0.0
    %124 = vmatprep.subr.mxu0 0.0
    %125 = vmatpush1.msra.mxu0 0.0
    %126 = vmatprep.subr.mxu0 0.0
    %127 = vmatpush1.msra.mxu0 0.0
    %128 = vmatprep.subr.mxu0 0.0
    %129 = vmatpush1.msra.mxu0 0.0
    %130 = vmatprep.subr.mxu0 0.0
    %131 = vmatpush1.msra.mxu0 0.0
    %132 = vmatprep.subr.mxu0 0.0
    %133 = vmatpush1.msra.mxu0 0.0
    %134 = vmatprep.subr.mxu0 0.0
    %135 = vmatpush1.msra.mxu0 0.0
    %136 = vmatprep.subr.mxu0 0.0
    %137 = vmatpush1.msra.mxu0 0.0
    %138 = vmatprep.subr.mxu0 0.0
    %139 = vmatpush1.msra.mxu0 0.0
    %140 = vmatprep.subr.mxu0 0.0
    %141 = vmatpush1.msra.mxu0 0.0
    %142 = vmatprep.subr.mxu0 0.0
    %143 = vmatpush1.msra.mxu0 0.0
    %144 = vmatprep.subr.mxu0 0.0
    %145 = vmatpush1.msra.mxu0 0.0
    %146 = vmatprep.subr.mxu0 0.0
    %147 = vmatpush1.msra.mxu0 0.0
    %148 = vmatprep.subr.mxu0 0.0
    %149 = vmatpush1.msra.mxu0 0.0
    %150 = vmatprep.subr.mxu0 0.0
    %151 = vmatpush1.msra.mxu0 0.0
    %152 = vmatprep.subr.mxu0 0.0
    %153 = vmatpush1.msra.mxu0 0.0
    %154 = vmatprep.subr.mxu0 0.0
    %155 = vmatpush1.msra.mxu0 0.0
    %156 = vmatprep.subr.mxu0 0.0
    %157 = vmatpush1.msra.mxu0 0.0
    %158 = vmatprep.subr.mxu0 0.0
    %159 = vmatpush1.msra.mxu0 0.0
    %160 = vmatprep.mubr.f32.mxu0 0.0
    %161 = vmatmul.mubr.f32.gmra.mrb[0].mxu0 %v94
    %v162 = vpop.f32.mrb[0].mxu0
    %v163 = vadd.f32 %v90, %v162
    %v164 = vpop.f32.mrb[0].mxu0
    %165 = vdwg.mxu0
    %v166 = vxor.u32 %v163, 2147483648
    %v167 = vmul.f32 %v166, 1.442695
    %v168 = vpow.pop %v167
    %v169 = vadd.f32 %v168, 1.0
    %v170 = vrcp.pop %v169
    %v171 = vmul.f32 1.0, %v170
    %v172 = vmul.f32 %v163, %v171
    %v173 = vld [vmem:[#allocation7] sm:$0xff]
    %v174 = vld [vmem:[#allocation7 + $0x8] sm:$0xff]
    %v175 = vld [vmem:[#allocation7 + $0x10] sm:$0xff]
    %v176 = vld [vmem:[#allocation7 + $0x18] sm:$0xff]
    %v177 = vld [vmem:[#allocation7 + $0x20] sm:$0xff]
    %v178 = vld [vmem:[#allocation7 + $0x28] sm:$0xff]
    %v179 = vld [vmem:[#allocation7 + $0x30] sm:$0xff]
    %v180 = vld [vmem:[#allocation7 + $0x38] sm:$0xff]
    %v181 = vld [vmem:[#allocation7 + $0x40] sm:$0xff]
    %v182 = vld [vmem:[#allocation7 + $0x48] sm:$0xff]
    %v183 = vld [vmem:[#allocation7 + $0x50] sm:$0xff]
    %v184 = vld [vmem:[#allocation7 + $0x58] sm:$0xff]
    %v185 = vld [vmem:[#allocation7 + $0x60] sm:$0xff]
    %v186 = vld [vmem:[#allocation7 + $0x68] sm:$0xff]
    %v187 = vld [vmem:[#allocation7 + $0x70] sm:$0xff]
    %v188 = vld [vmem:[#allocation7 + $0x78] sm:$0xff]
    %v189 = vld [vmem:[%s4] sm:$0x1]
    %v191 = vlaneseq
    %v192 = vshrl.u32 %v191, 7
    %v193 = vsub.s32 0, %v192
    %v194 = vrot.slane %v189, %v193
    %196 = vmatprep.subr.mxu0 0.0
    %197 = vmatpush1.msra.mxu0 %v173
    %198 = vmatprep.subr.mxu0 0.0
    %199 = vmatpush1.msra.mxu0 %v174
    %200 = vmatprep.subr.mxu0 0.0
    %201 = vmatpush1.msra.mxu0 %v175
    %202 = vmatprep.subr.mxu0 0.0
    %203 = vmatpush1.msra.mxu0 %v176
    %204 = vmatprep.subr.mxu0 0.0
    %205 = vmatpush1.msra.mxu0 %v177
    %206 = vmatprep.subr.mxu0 0.0
    %207 = vmatpush1.msra.mxu0 %v178
    %208 = vmatprep.subr.mxu0 0.0
    %209 = vmatpush1.msra.mxu0 %v179
    %210 = vmatprep.subr.mxu0 0.0
    %211 = vmatpush1.msra.mxu0 %v180
    %212 = vmatprep.subr.mxu0 0.0
    %213 = vmatpush1.msra.mxu0 %v181
    %214 = vmatprep.subr.mxu0 0.0
    %215 = vmatpush1.msra.mxu0 %v182
    %216 = vmatprep.subr.mxu0 0.0
    %217 = vmatpush1.msra.mxu0 %v183
    %218 = vmatprep.subr.mxu0 0.0
    %219 = vmatpush1.msra.mxu0 %v184
    %220 = vmatprep.subr.mxu0 0.0
    %221 = vmatpush1.msra.mxu0 %v185
    %222 = vmatprep.subr.mxu0 0.0
    %223 = vmatpush1.msra.mxu0 %v186
    %224 = vmatprep.subr.mxu0 0.0
    %225 = vmatpush1.msra.mxu0 %v187
    %226 = vmatprep.subr.mxu0 0.0
    %227 = vmatpush1.msra.mxu0 %v188
    %228 = vmatprep.subr.mxu0 0.0
    %229 = vmatpush1.msra.mxu0 0.0
    %230 = vmatprep.subr.mxu0 0.0
    %231 = vmatpush1.msra.mxu0 0.0
    %232 = vmatprep.subr.mxu0 0.0
    %233 = vmatpush1.msra.mxu0 0.0
    %234 = vmatprep.subr.mxu0 0.0
    %235 = vmatpush1.msra.mxu0 0.0
    %236 = vmatprep.subr.mxu0 0.0
    %237 = vmatpush1.msra.mxu0 0.0
    %238 = vmatprep.subr.mxu0 0.0
    %239 = vmatpush1.msra.mxu0 0.0
    %240 = vmatprep.subr.mxu0 0.0
    %241 = vmatpush1.msra.mxu0 0.0
    %242 = vmatprep.subr.mxu0 0.0
    %243 = vmatpush1.msra.mxu0 0.0
    %244 = vmatprep.subr.mxu0 0.0
    %245 = vmatpush1.msra.mxu0 0.0
    %246 = vmatprep.subr.mxu0 0.0
    %247 = vmatpush1.msra.mxu0 0.0
    %248 = vmatprep.subr.mxu0 0.0
    %249 = vmatpush1.msra.mxu0 0.0
    %250 = vmatprep.subr.mxu0 0.0
    %251 = vmatpush1.msra.mxu0 0.0
    %252 = vmatprep.subr.mxu0 0.0
    %253 = vmatpush1.msra.mxu0 0.0
    %254 = vmatprep.subr.mxu0 0.0
    %255 = vmatpush1.msra.mxu0 0.0
    %256 = vmatprep.subr.mxu0 0.0
    %257 = vmatpush1.msra.mxu0 0.0
    %258 = vmatprep.subr.mxu0 0.0
    %259 = vmatpush1.msra.mxu0 0.0
    %260 = vmatprep.mubr.f32.mxu0 0.0
    %261 = vmatmul.mubr.f32.gmra.mrb[0].mxu0 %v172
    %v262 = vpop.f32.mrb[0].mxu0
    %v263 = vadd.f32 %v194, %v262
    %v264 = vpop.f32.mrb[0].mxu0
    %265 = vdwg.mxu0
    %v266 = vxor.u32 %v263, 2147483648
    %v267 = vmul.f32 %v266, 1.442695
    %v268 = vpow.pop %v267
    %v269 = vadd.f32 %v268, 1.0
    %v270 = vrcp.pop %v269
    %v271 = vmul.f32 1.0, %v270
    %v272 = vmul.f32 %v263, %v271
    %v273 = vld [vmem:[#allocation8] sm:$0xff]
    %v274 = vld [vmem:[#allocation8 + $0x8] sm:$0xff]
    %v275 = vld [vmem:[#allocation8 + $0x10] sm:$0xff]
    %v276 = vld [vmem:[#allocation8 + $0x18] sm:$0xff]
    %v277 = vld [vmem:[#allocation8 + $0x20] sm:$0xff]
    %v278 = vld [vmem:[#allocation8 + $0x28] sm:$0xff]
    %v279 = vld [vmem:[#allocation8 + $0x30] sm:$0xff]
    %v280 = vld [vmem:[#allocation8 + $0x38] sm:$0xff]
    %v281 = vld [vmem:[#allocation8 + $0x40] sm:$0xff]
    %v282 = vld [vmem:[#allocation8 + $0x48] sm:$0xff]
    %v283 = vld [vmem:[#allocation8 + $0x50] sm:$0xff]
    %v284 = vld [vmem:[#allocation8 + $0x58] sm:$0xff]
    %v285 = vld [vmem:[#allocation8 + $0x60] sm:$0xff]
    %v286 = vld [vmem:[#allocation8 + $0x68] sm:$0xff]
    %v287 = vld [vmem:[#allocation8 + $0x70] sm:$0xff]
    %v288 = vld [vmem:[#allocation8 + $0x78] sm:$0xff]
    %v289 = vld [vmem:[%s6] sm:$0x1]
    %v291 = vlaneseq
    %v292 = vshrl.u32 %v291, 7
    %v293 = vsub.s32 0, %v292
    %v294 = vrot.slane %v289, %v293
    %296 = vmatprep.subr.mxu0 0.0
    %297 = vmatpush1.msra.mxu0 %v273
    %298 = vmatprep.subr.mxu0 0.0
    %299 = vmatpush1.msra.mxu0 %v274
    %300 = vmatprep.subr.mxu0 0.0
    %301 = vmatpush1.msra.mxu0 %v275
    %302 = vmatprep.subr.mxu0 0.0
    %303 = vmatpush1.msra.mxu0 %v276
    %304 = vmatprep.subr.mxu0 0.0
    %305 = vmatpush1.msra.mxu0 %v277
    %306 = vmatprep.subr.mxu0 0.0
    %307 = vmatpush1.msra.mxu0 %v278
    %308 = vmatprep.subr.mxu0 0.0
    %309 = vmatpush1.msra.mxu0 %v279
    %310 = vmatprep.subr.mxu0 0.0
    %311 = vmatpush1.msra.mxu0 %v280
    %312 = vmatprep.subr.mxu0 0.0
    %313 = vmatpush1.msra.mxu0 %v281
    %314 = vmatprep.subr.mxu0 0.0
    %315 = vmatpush1.msra.mxu0 %v282
    %316 = vmatprep.subr.mxu0 0.0
    %317 = vmatpush1.msra.mxu0 %v283
    %318 = vmatprep.subr.mxu0 0.0
    %319 = vmatpush1.msra.mxu0 %v284
    %320 = vmatprep.subr.mxu0 0.0
    %321 = vmatpush1.msra.mxu0 %v285
    %322 = vmatprep.subr.mxu0 0.0
    %323 = vmatpush1.msra.mxu0 %v286
    %324 = vmatprep.subr.mxu0 0.0
    %325 = vmatpush1.msra.mxu0 %v287
    %326 = vmatprep.subr.mxu0 0.0
    %327 = vmatpush1.msra.mxu0 %v288
    %328 = vmatprep.subr.mxu0 0.0
    %329 = vmatpush1.msra.mxu0 0.0
    %330 = vmatprep.subr.mxu0 0.0
    %331 = vmatpush1.msra.mxu0 0.0
    %332 = vmatprep.subr.mxu0 0.0
    %333 = vmatpush1.msra.mxu0 0.0
    %334 = vmatprep.subr.mxu0 0.0
    %335 = vmatpush1.msra.mxu0 0.0
    %336 = vmatprep.subr.mxu0 0.0
    %337 = vmatpush1.msra.mxu0 0.0
    %338 = vmatprep.subr.mxu0 0.0
    %339 = vmatpush1.msra.mxu0 0.0
    %340 = vmatprep.subr.mxu0 0.0
    %341 = vmatpush1.msra.mxu0 0.0
    %342 = vmatprep.subr.mxu0 0.0
    %343 = vmatpush1.msra.mxu0 0.0
    %344 = vmatprep.subr.mxu0 0.0
    %345 = vmatpush1.msra.mxu0 0.0
    %346 = vmatprep.subr.mxu0 0.0
    %347 = vmatpush1.msra.mxu0 0.0
    %348 = vmatprep.subr.mxu0 0.0
    %349 = vmatpush1.msra.mxu0 0.0
    %350 = vmatprep.subr.mxu0 0.0
    %351 = vmatpush1.msra.mxu0 0.0
    %352 = vmatprep.subr.mxu0 0.0
    %353 = vmatpush1.msra.mxu0 0.0
    %354 = vmatprep.subr.mxu0 0.0
    %355 = vmatpush1.msra.mxu0 0.0
    %356 = vmatprep.subr.mxu0 0.0
    %357 = vmatpush1.msra.mxu0 0.0
    %358 = vmatprep.subr.mxu0 0.0
    %359 = vmatpush1.msra.mxu0 0.0
    %360 = vmatprep.mubr.f32.mxu0 0.0
    %361 = vmatmul.mubr.f32.gmra.mrb[0].mxu0 %v272
    %v362 = vpop.f32.mrb[0].mxu0
    %v363 = vadd.f32 %v294, %v362
    %v364 = vpop.f32.mrb[0].mxu0
    %365 = vdwg.mxu0
    %366 = vst [vmem:[#allocation10] sm:$0xff] %v363
    // Predicated region
    $region46: #{tpu_custom_call.1} parent=1 // pred_check
      _
    $region47: #{tpu_custom_call.1} parent=1 // pred_check_branch
      %368 = sbr.rel (0) target = $region49
    $region48: #{tpu_custom_call.1} parent=1 // pred_region
      %s370 = ssub.s32 128, 128
      %371 = vsyncadd [#allocation4], %s370
      %s373 = sshll.u32 [#allocation10], 4
      %s374 = int_to_ptr.vmem [resolvable:$true] %s373
      %376 = dma.vmem_to_hbm [thread:$0]  %s374, 128, %s7, [#allocation4]
    $region49: #{tpu_custom_call.1} parent=1 // pred_fallthru
      _
    // Predicated region
    $region50: #{tpu_custom_call.1} parent=1 // pred_check
      _
    $region51: #{tpu_custom_call.1} parent=1 // pred_check_branch
      %378 = sbr.rel (0) target = $region53
    $region52: #{tpu_custom_call.1} parent=1 // pred_region
      %379 = dma.done [#allocation4], 128
    $region53: #{tpu_custom_call.1} parent=1 // pred_fallthru
      _
    %380 = vsyncpa [#allocation3], 1
    %381 = vsyncpa [#allocation6], 1
    %382 = vsyncpa [#allocation9], 1
    %383 = vsyncpa [#allocation4], 1

</llo_original>
